<compile_context>
chip_gen: v7x
topology: tpu7x:2x2x1
jax: 0.10.0
libtpu: 0.0.40
codegen_flags: <defaults>
</compile_context>

<pallas_src>
import functools

import numpy as np
import jax
import jax.numpy as jnp
from jax import lax
from jax.experimental import pallas as pl
from jax.experimental.pallas import tpu as pltpu


def _round_up(n, m):
    return ((n + m - 1) // m) * m


# ---------------------------------------------------------------------------
# Fused kernel: all NODE blocks + classifier, batch-on-lanes (transposed) layout.
# ---------------------------------------------------------------------------
def fused_node_kernel(x_ref, wdec_ref, wattn_ref, wfc_ref, fcb_ref, ptree_ref, wcls_ref,
                      out_ref, *, num_blocks, tree_depth, num_trees, num_leaves,
                      unroll_blocks):
    T, K, L = num_trees, tree_depth, num_leaves

    def block_step(blk, x):
        xb = x.astype(jnp.bfloat16)                       # (d_pad, TB)

        # --- All depth levels of all trees in ONE matmul; decision bias rides in the
        #     constant-1 feature row of x, so it is folded into the matmul.            ---
        dec = jnp.dot(wdec_ref[blk], xb, preferred_element_type=jnp.float32)   # (K*T, TB)
        d = jax.nn.sigmoid(dec)

        pt = ptree_ref[blk]                               # (T, 3+L) f32 small per-tree params
        leafv = pt[:, 3:3 + L]                            # (T, L) leaf values

        # --- Bottom-up leaf fold (MSB-first codes): deepest decision combines sibling
        #     leaves, then fold upward level by level.                                ---
        d_last = d[(K - 1) * T:K * T, :]                  # (T, TB) aligned sublane slice
        nd_last = 1.0 - d_last
        vals = [nd_last * leafv[:, 2 * j:2 * j + 1] + d_last * leafv[:, 2 * j + 1:2 * j + 2]
                for j in range(L // 2)]
        for k in range(K - 2, -1, -1):
            dk = d[k * T:(k + 1) * T, :]
            ndk = 1.0 - dk
            vals = [ndk * vals[2 * j] + dk * vals[2 * j + 1] for j in range(len(vals) // 2)]
        tree_outs = vals[0]                               # (T, TB)

        # --- Attention gating over trees: softmax along the tree (sublane) axis ---
        attn = (jnp.dot(wattn_ref[blk], tree_outs.astype(jnp.bfloat16),
                        preferred_element_type=jnp.float32) + pt[:, 0:1])
        attn = attn - jnp.max(attn, axis=0, keepdims=True)
        e = jnp.exp(attn)
        s = jnp.sum(e, axis=0, keepdims=True)
        r = pl.reciprocal(s, approx=True)
        r = r * (2.0 - s * r)                             # one Newton step -> near-exact
        gated = tree_outs * (e * r)

        # --- BatchNorm1d (eval, folded) + Dropout (identity in eval) ---
        normed = gated * pt[:, 1:2] + pt[:, 2:3]

        # --- Projection back to feature rows + residual ---
        proj = (jnp.dot(wfc_ref[blk], normed.astype(jnp.bfloat16),
                        preferred_element_type=jnp.float32) + fcb_ref[blk])
        return x + proj

    x = x_ref[...]                                        # (d_pad, TB) f32, lane-dense
    if unroll_blocks:
        for blk in range(num_blocks):
            x = block_step(blk, x)
    else:
        x = lax.fori_loop(0, num_blocks, block_step, x)

    # --- Classifier (Dropout before it is identity); bias folded via the constant-1 row ---
    out_ref[...] = jnp.dot(wcls_ref[...], x.astype(jnp.bfloat16),
                           preferred_element_type=jnp.float32)


# ---------------------------------------------------------------------------
# Wrapper: transposed padding, tiling, BlockSpecs, grid, VMEM budget, cost estimate.
# ---------------------------------------------------------------------------
def node_model_forward(x, packed, *, input_dim, num_blocks, num_trees, tree_depth,
                       num_classes, max_tile_b=512):
    wdec, wattn, wfc, fcb, ptree, wcls_t = packed
    num_leaves = 2 ** tree_depth
    kt = tree_depth * num_trees
    batch = x.shape[0]
    d_pad = wdec.shape[2]                                 # includes the constant-1 row
    c_pad = wcls_t.shape[0]

    weight_bytes = sum(int(a.size) * a.dtype.itemsize for a in packed)

    # --- Batch tiling: lane-dense (multiple of 128), balanced, >=2 steps when batch allows
    #     (so v7x's second TensorCore gets work via the "parallel" grid axis). ---
    b128 = _round_up(batch, 128)
    n_tiles = pl.cdiv(b128, max_tile_b)
    if n_tiles == 1 and b128 >= 256:
        n_tiles = 2
    tile_b = _round_up(pl.cdiv(b128, n_tiles), 128)

    def act_bytes(tb):
        # double-buffered x/out tiles (f32) + in-kernel bf16 copies of x and tree intermediates
        return 2 * tb * (d_pad * 4 + c_pad * 4) + tb * (d_pad + 4 * kt) * 4

    vmem_budget = 48 * (1 << 20)                          # keep well inside v7x's 64 MiB
    while tile_b > 128 and 2 * weight_bytes + act_bytes(tile_b) > vmem_budget:
        tile_b -= 128
    b_pad = _round_up(b128, tile_b)
    vmem_limit = int(min(64 * (1 << 20),
                         max(32 * (1 << 20), 2 * weight_bytes + act_bytes(tile_b) + (4 << 20))))

    # --- Transposed, zero-padded activation with a constant-1 row at index input_dim
    #     (folds decision & classifier biases into the matmuls). ---
    x_t = jnp.zeros((d_pad, b_pad), jnp.float32)
    x_t = x_t.at[:input_dim, :batch].set(jnp.asarray(x, jnp.float32).T)
    x_t = x_t.at[input_dim, :].set(1.0)

    kernel = functools.partial(
        fused_node_kernel, num_blocks=num_blocks, tree_depth=tree_depth,
        num_trees=num_trees, num_leaves=num_leaves, unroll_blocks=(num_blocks <= 8))

    # Advisory cost estimate for XLA's scheduler.
    per_row_block = (2 * d_pad * kt                        # decision matmul
                     + 2 * num_trees * num_trees           # attention matmul
                     + 2 * num_trees * d_pad + 2 * d_pad   # projection matmul + bias/residual
                     + (2 ** (tree_depth + 1) + 10) * num_trees)   # leaf fold / softmax / BN
    flops = int(b_pad * (num_blocks * per_row_block + 2 * d_pad * c_pad))
    transcendentals = int(b_pad * num_blocks * (kt + num_trees + 1))
    bytes_accessed = int(weight_bytes + b_pad * d_pad * 4 + b_pad * c_pad * 4)

    out_t = pl.pallas_call(
        kernel,
        out_shape=jax.ShapeDtypeStruct((c_pad, b_pad), jnp.float32),
        grid=(b_pad // tile_b,),
        in_specs=[
            pl.BlockSpec((d_pad, tile_b), lambda i: (0, i)),        # x^T: batch-tiled on lanes
            pl.BlockSpec(wdec.shape, lambda i: (0, 0, 0)),          # resident weights
            pl.BlockSpec(wattn.shape, lambda i: (0, 0, 0)),
            pl.BlockSpec(wfc.shape, lambda i: (0, 0, 0)),
            pl.BlockSpec(fcb.shape, lambda i: (0, 0, 0)),
            pl.BlockSpec(ptree.shape, lambda i: (0, 0, 0)),
            pl.BlockSpec(wcls_t.shape, lambda i: (0, 0)),
        ],
        out_specs=pl.BlockSpec((c_pad, tile_b), lambda i: (0, i)),
        compiler_params=pltpu.CompilerParams(
            dimension_semantics=("parallel",),
            vmem_limit_bytes=vmem_limit),
        cost_estimate=pl.CostEstimate(flops=flops, transcendentals=transcendentals,
                                      bytes_accessed=bytes_accessed),
    )(x_t, wdec, wattn, wfc, fcb, ptree, wcls_t)

    return out_t[:num_classes, :batch].T


# ---------------------------------------------------------------------------
# Parameter setup (deterministic, synthetic) + host-side packing.
# ---------------------------------------------------------------------------
def init_params(key, input_dim, num_blocks, num_trees, tree_depth, num_classes):
    """Raw parameters mirroring the PyTorch module (math convention: y = x @ W + b)."""
    num_leaves = 2 ** tree_depth
    blocks = []
    for _ in range(num_blocks):
        key, *ks = jax.random.split(key, 12)
        p = dict(
            dec_w=0.1 * jax.random.normal(ks[0], (num_trees, input_dim, tree_depth), jnp.float32),
            dec_b=0.1 * jax.random.normal(ks[1], (num_trees, tree_depth), jnp.float32),
            leaf_v=jax.random.normal(ks[2], (num_trees, num_leaves), jnp.float32),
            attn_w=0.1 * jax.random.normal(ks[3], (num_trees, num_trees), jnp.float32),
            attn_b=0.1 * jax.random.normal(ks[4], (num_trees,), jnp.float32),
            bn_gamma=1.0 + 0.1 * jax.random.normal(ks[5], (num_trees,), jnp.float32),
            bn_beta=0.1 * jax.random.normal(ks[6], (num_trees,), jnp.float32),
            bn_mean=0.1 * jax.random.normal(ks[7], (num_trees,), jnp.float32),
            bn_var=1.0 + 0.1 * jnp.abs(jax.random.normal(ks[8], (num_trees,), jnp.float32)),
            fc_w=0.1 * jax.random.normal(ks[9], (num_trees, input_dim), jnp.float32),
            fc_b=0.1 * jax.random.normal(ks[10], (input_dim,), jnp.float32),
        )
        blocks.append(p)
    key, k1, k2 = jax.random.split(key, 3)
    wc = 0.1 * jax.random.normal(k1, (input_dim, num_classes), jnp.float32)
    bc = 0.1 * jax.random.normal(k2, (num_classes,), jnp.float32)
    return blocks, wc, bc


def pack_params(blocks, wc, bc, *, input_dim, num_trees, tree_depth, num_classes, eps=1e-5):
    """Pack/pre-transpose params into the transposed (batch-on-lanes) layout the kernel expects.

    Row `input_dim` of the activation is a constant 1, so the decision biases and the
    classifier bias are folded into column `input_dim` of their weight matrices.
    Matmul weights are stored in bf16; small elementwise params stay f32.
    """
    nb = len(blocks)
    T, K = num_trees, tree_depth
    L = 2 ** K
    kt = K * T
    d_pad = _round_up(input_dim + 1, 8)      # +1 row for the constant-1 feature
    c_pad = _round_up(num_classes, 8)

    wdec = np.zeros((nb, kt, d_pad), np.float32)      # row k*T+t = decision of tree t, depth k
    wattn = np.zeros((nb, T, T), np.float32)          # attn_w^T
    wfc = np.zeros((nb, d_pad, T), np.float32)        # fc_w^T
    fcb = np.zeros((nb, d_pad, 1), np.float32)        # fc bias as a column
    ptree = np.zeros((nb, T, 3 + L), np.float32)      # [attn_b | bn_scale | bn_shift | leaf_v]

    for i, p in enumerate(blocks):
        dec_w = np.asarray(p['dec_w'])                # (T, D, K)
        dec_b = np.asarray(p['dec_b'])                # (T, K)
        wdec[i, :, :input_dim] = np.transpose(dec_w, (2, 0, 1)).reshape(kt, input_dim)
        wdec[i, :, input_dim] = dec_b.T.reshape(kt)
        wattn[i] = np.asarray(p['attn_w']).T
        wfc[i, :input_dim, :] = np.asarray(p['fc_w']).T
        fcb[i, :input_dim, 0] = np.asarray(p['fc_b'])
        scale = np.asarray(p['bn_gamma']) / np.sqrt(np.asarray(p['bn_var']) + eps)
        shift = np.asarray(p['bn_beta']) - np.asarray(p['bn_mean']) * scale
        ptree[i, :, 0] = np.asarray(p['attn_b'])
        ptree[i, :, 1] = scale
        ptree[i, :, 2] = shift
        ptree[i, :, 3:3 + L] = np.asarray(p['leaf_v'])

    wcls_t = np.zeros((c_pad, d_pad), np.float32)
    wcls_t[:num_classes, :input_dim] = np.asarray(wc).T
    wcls_t[:num_classes, input_dim] = np.asarray(bc)

    bf16 = lambda a: jnp.asarray(a, jnp.bfloat16)
    return (bf16(wdec), bf16(wattn), bf16(wfc),
            jnp.asarray(fcb), jnp.asarray(ptree), bf16(wcls_t))


# ---------------------------------------------------------------------------
# Pure-JAX reference (mirrors the PyTorch forward, full f32; for correctness check).
# ---------------------------------------------------------------------------
def make_leaf_codes(tree_depth):
    num_leaves = 2 ** tree_depth
    return np.array([[(l >> (tree_depth - 1 - k)) & 1 for k in range(tree_depth)]
                     for l in range(num_leaves)], dtype=np.float32)


def reference_forward(x, blocks, wc, bc, codes, eps=1e-5):
    c = jnp.asarray(codes)                                             # (L, K)
    for p in blocks:
        d = jax.nn.sigmoid(jnp.einsum('bd,tdk->btk', x, p['dec_w']) + p['dec_b'][None])  # (B,T,K)
        probs = (d[:, :, None, :] * c[None, None] +
                 (1.0 - d[:, :, None, :]) * (1.0 - c[None, None]))                        # (B,T,L,K)
        leaf_probs = jnp.prod(probs, axis=-1)                                             # (B,T,L)
        tree_outs = jnp.einsum('btl,tl->bt', leaf_probs, p['leaf_v'])                     # (B,T)
        attn = jax.nn.softmax(tree_outs @ p['attn_w'] + p['attn_b'], axis=-1)
        gated = tree_outs * attn
        normed = ((gated - p['bn_mean']) / jnp.sqrt(p['bn_var'] + eps)
                  * p['bn_gamma'] + p['bn_beta'])
        x = x + normed @ p['fc_w'] + p['fc_b']
    return x @ wc + bc


if __name__ == "__main__":
    # Small shapes consistent with the module's forward: x is (batch, input_dim).
    batch, input_dim = 8, 32
    num_blocks, num_trees, tree_depth, num_classes = 2, 8, 3, 4

    key = jax.random.PRNGKey(0)
    key, xk = jax.random.split(key)
    x = jax.random.normal(xk, (batch, input_dim), jnp.float32)

    blocks, wc, bc = init_params(key, input_dim, num_blocks, num_trees, tree_depth, num_classes)
    packed = pack_params(blocks, wc, bc, input_dim=input_dim, num_trees=num_trees,
                         tree_depth=tree_depth, num_classes=num_classes)

    logits = node_model_forward(x, packed, input_dim=input_dim, num_blocks=num_blocks,
                                num_trees=num_trees, tree_depth=tree_depth,
                                num_classes=num_classes)
    logits = jax.block_until_ready(logits)

    codes = make_leaf_codes(tree_depth)
    ref = reference_forward(x, blocks, wc, bc, codes)
    # Tolerance accounts for bf16 matmul operands (f32 accumulation) in the kernel vs the
    # full-f32 reference.
    np.testing.assert_allclose(np.asarray(logits), np.asarray(ref), rtol=2e-2, atol=2e-2)

    print("KERNEL_OK")
</pallas_src>

<mosaic_0001>
module attributes {stable_mosaic.version = 11 : i64} {
  func.func @fused_node_kernel(%arg0: i32, %arg1: memref<40x128xf32, #tpu.memory_space<vmem>>, %arg2: memref<2x24x40xbf16, #tpu.memory_space<vmem>>, %arg3: memref<2x8x8xbf16, #tpu.memory_space<vmem>>, %arg4: memref<2x40x8xbf16, #tpu.memory_space<vmem>>, %arg5: memref<2x40x1xf32, #tpu.memory_space<vmem>>, %arg6: memref<2x8x11xf32, #tpu.memory_space<vmem>>, %arg7: memref<8x40xbf16, #tpu.memory_space<vmem>>, %arg8: memref<8x128xf32, #tpu.memory_space<vmem>>) attributes {dimension_semantics = [#tpu.dimension_semantics<parallel>], iteration_bounds = array<i64: 1>, scalar_prefetch = 0 : i64, scratch_operands = 0 : i64, tpu.core_type = #tpu.core_type<tc>, window_params = [{transform_indices = @transform_0, window_bounds = array<i64: 40, 128>}, {pipeline_mode = #tpu.pipeline_mode<synchronous>, transform_indices = @transform_1, window_bounds = array<i64: 2, 24, 40>}, {pipeline_mode = #tpu.pipeline_mode<synchronous>, transform_indices = @transform_2, window_bounds = array<i64: 2, 8, 8>}, {pipeline_mode = #tpu.pipeline_mode<synchronous>, transform_indices = @transform_3, window_bounds = array<i64: 2, 40, 8>}, {pipeline_mode = #tpu.pipeline_mode<synchronous>, transform_indices = @transform_4, window_bounds = array<i64: 2, 40, 1>}, {pipeline_mode = #tpu.pipeline_mode<synchronous>, transform_indices = @transform_5, window_bounds = array<i64: 2, 8, 11>}, {pipeline_mode = #tpu.pipeline_mode<synchronous>, transform_indices = @transform_6, window_bounds = array<i64: 8, 40>}, {transform_indices = @transform_7, window_bounds = array<i64: 8, 128>}]} {
    %c0 = arith.constant 0 : index
    %c0_0 = arith.constant 0 : index
    %0 = vector.load %arg1[%c0, %c0_0] : memref<40x128xf32, #tpu.memory_space<vmem>>, vector<40x128xf32>
    %1 = arith.truncf %0 : vector<40x128xf32> to vector<40x128xbf16>
    %c0_1 = arith.constant 0 : index
    %c0_2 = arith.constant 0 : index
    %c0_3 = arith.constant 0 : index
    %2 = vector.load %arg2[%c0_1, %c0_2, %c0_3] : memref<2x24x40xbf16, #tpu.memory_space<vmem>>, vector<1x24x40xbf16>
    %3 = vector.shape_cast %2 : vector<1x24x40xbf16> to vector<24x40xbf16>
    %cst = arith.constant dense<0.000000e+00> : vector<24x128xf32>
    %4 = tpu.matmul %3, %1, %cst {dimension_numbers = #tpu.dot_dimension_numbers<[1], [0], [0], [1], [0, 0, 1, 1], [], []>} : vector<24x40xbf16>, vector<40x128xbf16>, vector<24x128xf32> -> vector<24x128xf32>
    %5 = arith.negf %4 : vector<24x128xf32>
    %6 = math.exp %5 : vector<24x128xf32>
    %cst_4 = arith.constant 1.000000e+00 : f32
    %7 = vector.broadcast %cst_4 : f32 to vector<24x128xf32>
    %8 = arith.addf %7, %6 : vector<24x128xf32>
    %9 = arith.divf %7, %8 : vector<24x128xf32>
    %c0_5 = arith.constant 0 : index
    %c0_6 = arith.constant 0 : index
    %c0_7 = arith.constant 0 : index
    %10 = vector.load %arg6[%c0_5, %c0_6, %c0_7] : memref<2x8x11xf32, #tpu.memory_space<vmem>>, vector<1x8x11xf32>
    %11 = vector.shape_cast %10 : vector<1x8x11xf32> to vector<8x11xf32>
    %12 = vector.extract_strided_slice %11 {offsets = [0, 3], sizes = [8, 8], strides = [1, 1]} : vector<8x11xf32> to vector<8x8xf32>
    %13 = vector.extract_strided_slice %9 {offsets = [16, 0], sizes = [8, 128], strides = [1, 1]} : vector<24x128xf32> to vector<8x128xf32>
    %cst_8 = arith.constant 1.000000e+00 : f32
    %14 = vector.broadcast %cst_8 : f32 to vector<8x128xf32>
    %15 = arith.subf %14, %13 : vector<8x128xf32>
    %16 = vector.extract_strided_slice %12 {offsets = [0, 0], sizes = [8, 1], strides = [1, 1]} : vector<8x8xf32> to vector<8x1xf32>
    %17 = vector.broadcast %16 : vector<8x1xf32> to vector<8x128xf32>
    %18 = arith.mulf %15, %17 : vector<8x128xf32>
    %19 = vector.extract_strided_slice %12 {offsets = [0, 1], sizes = [8, 1], strides = [1, 1]} : vector<8x8xf32> to vector<8x1xf32>
    %20 = vector.broadcast %19 : vector<8x1xf32> to vector<8x128xf32>
    %21 = arith.mulf %13, %20 : vector<8x128xf32>
    %22 = arith.addf %18, %21 : vector<8x128xf32>
    %23 = vector.extract_strided_slice %12 {offsets = [0, 2], sizes = [8, 1], strides = [1, 1]} : vector<8x8xf32> to vector<8x1xf32>
    %24 = vector.broadcast %23 : vector<8x1xf32> to vector<8x128xf32>
    %25 = arith.mulf %15, %24 : vector<8x128xf32>
    %26 = vector.extract_strided_slice %12 {offsets = [0, 3], sizes = [8, 1], strides = [1, 1]} : vector<8x8xf32> to vector<8x1xf32>
    %27 = vector.broadcast %26 : vector<8x1xf32> to vector<8x128xf32>
    %28 = arith.mulf %13, %27 : vector<8x128xf32>
    %29 = arith.addf %25, %28 : vector<8x128xf32>
    %30 = vector.extract_strided_slice %12 {offsets = [0, 4], sizes = [8, 1], strides = [1, 1]} : vector<8x8xf32> to vector<8x1xf32>
    %31 = vector.broadcast %30 : vector<8x1xf32> to vector<8x128xf32>
    %32 = arith.mulf %15, %31 : vector<8x128xf32>
    %33 = vector.extract_strided_slice %12 {offsets = [0, 5], sizes = [8, 1], strides = [1, 1]} : vector<8x8xf32> to vector<8x1xf32>
    %34 = vector.broadcast %33 : vector<8x1xf32> to vector<8x128xf32>
    %35 = arith.mulf %13, %34 : vector<8x128xf32>
    %36 = arith.addf %32, %35 : vector<8x128xf32>
    %37 = vector.extract_strided_slice %12 {offsets = [0, 6], sizes = [8, 1], strides = [1, 1]} : vector<8x8xf32> to vector<8x1xf32>
    %38 = vector.broadcast %37 : vector<8x1xf32> to vector<8x128xf32>
    %39 = arith.mulf %15, %38 : vector<8x128xf32>
    %40 = vector.extract_strided_slice %12 {offsets = [0, 7], sizes = [8, 1], strides = [1, 1]} : vector<8x8xf32> to vector<8x1xf32>
    %41 = vector.broadcast %40 : vector<8x1xf32> to vector<8x128xf32>
    %42 = arith.mulf %13, %41 : vector<8x128xf32>
    %43 = arith.addf %39, %42 : vector<8x128xf32>
    %44 = vector.extract_strided_slice %9 {offsets = [8, 0], sizes = [8, 128], strides = [1, 1]} : vector<24x128xf32> to vector<8x128xf32>
    %cst_9 = arith.constant 1.000000e+00 : f32
    %45 = vector.broadcast %cst_9 : f32 to vector<8x128xf32>
    %46 = arith.subf %45, %44 : vector<8x128xf32>
    %47 = arith.mulf %46, %22 : vector<8x128xf32>
    %48 = arith.mulf %44, %29 : vector<8x128xf32>
    %49 = arith.addf %47, %48 : vector<8x128xf32>
    %50 = arith.mulf %46, %36 : vector<8x128xf32>
    %51 = arith.mulf %44, %43 : vector<8x128xf32>
    %52 = arith.addf %50, %51 : vector<8x128xf32>
    %53 = vector.extract_strided_slice %9 {offsets = [0, 0], sizes = [8, 128], strides = [1, 1]} : vector<24x128xf32> to vector<8x128xf32>
    %cst_10 = arith.constant 1.000000e+00 : f32
    %54 = vector.broadcast %cst_10 : f32 to vector<8x128xf32>
    %55 = arith.subf %54, %53 : vector<8x128xf32>
    %56 = arith.mulf %55, %49 : vector<8x128xf32>
    %57 = arith.mulf %53, %52 : vector<8x128xf32>
    %58 = arith.addf %56, %57 : vector<8x128xf32>
    %c0_11 = arith.constant 0 : index
    %c0_12 = arith.constant 0 : index
    %c0_13 = arith.constant 0 : index
    %59 = vector.load %arg3[%c0_11, %c0_12, %c0_13] : memref<2x8x8xbf16, #tpu.memory_space<vmem>>, vector<1x8x8xbf16>
    %60 = vector.shape_cast %59 : vector<1x8x8xbf16> to vector<8x8xbf16>
    %61 = arith.truncf %58 : vector<8x128xf32> to vector<8x128xbf16>
    %cst_14 = arith.constant dense<0.000000e+00> : vector<8x128xf32>
    %62 = tpu.matmul %60, %61, %cst_14 {dimension_numbers = #tpu.dot_dimension_numbers<[1], [0], [0], [1], [0, 0, 1, 1], [], []>} : vector<8x8xbf16>, vector<8x128xbf16>, vector<8x128xf32> -> vector<8x128xf32>
    %63 = vector.extract_strided_slice %11 {offsets = [0, 0], sizes = [8, 1], strides = [1, 1]} : vector<8x11xf32> to vector<8x1xf32>
    %64 = vector.broadcast %63 : vector<8x1xf32> to vector<8x128xf32>
    %65 = arith.addf %62, %64 : vector<8x128xf32>
    %cst_15 = arith.constant dense<0xFF800000> : vector<128xf32>
    %66 = vector.multi_reduction <maximumf>, %65, %cst_15 [0] : vector<8x128xf32> to vector<128xf32>
    %67 = vector.shape_cast %66 : vector<128xf32> to vector<1x128xf32>
    %68 = vector.broadcast %67 : vector<1x128xf32> to vector<8x128xf32>
    %69 = arith.subf %65, %68 : vector<8x128xf32>
    %70 = math.exp %69 : vector<8x128xf32>
    %cst_16 = arith.constant dense<0.000000e+00> : vector<128xf32>
    %71 = vector.multi_reduction <add>, %70, %cst_16 [0] : vector<8x128xf32> to vector<128xf32>
    %72 = vector.shape_cast %71 : vector<128xf32> to vector<1x128xf32>
    %73 = tpu.reciprocal %72 {approx = true} : vector<1x128xf32> -> vector<1x128xf32>
    %74 = arith.mulf %72, %73 : vector<1x128xf32>
    %cst_17 = arith.constant 2.000000e+00 : f32
    %75 = vector.broadcast %cst_17 : f32 to vector<1x128xf32>
    %76 = arith.subf %75, %74 : vector<1x128xf32>
    %77 = arith.mulf %73, %76 : vector<1x128xf32>
    %78 = vector.broadcast %77 : vector<1x128xf32> to vector<8x128xf32>
    %79 = arith.mulf %70, %78 : vector<8x128xf32>
    %80 = arith.mulf %58, %79 : vector<8x128xf32>
    %81 = vector.extract_strided_slice %11 {offsets = [0, 1], sizes = [8, 1], strides = [1, 1]} : vector<8x11xf32> to vector<8x1xf32>
    %82 = vector.broadcast %81 : vector<8x1xf32> to vector<8x128xf32>
    %83 = arith.mulf %80, %82 : vector<8x128xf32>
    %84 = vector.extract_strided_slice %11 {offsets = [0, 2], sizes = [8, 1], strides = [1, 1]} : vector<8x11xf32> to vector<8x1xf32>
    %85 = vector.broadcast %84 : vector<8x1xf32> to vector<8x128xf32>
    %86 = arith.addf %83, %85 : vector<8x128xf32>
    %c0_18 = arith.constant 0 : index
    %c0_19 = arith.constant 0 : index
    %c0_20 = arith.constant 0 : index
    %87 = vector.load %arg4[%c0_18, %c0_19, %c0_20] : memref<2x40x8xbf16, #tpu.memory_space<vmem>>, vector<1x40x8xbf16>
    %88 = vector.shape_cast %87 : vector<1x40x8xbf16> to vector<40x8xbf16>
    %89 = arith.truncf %86 : vector<8x128xf32> to vector<8x128xbf16>
    %cst_21 = arith.constant dense<0.000000e+00> : vector<40x128xf32>
    %90 = tpu.matmul %88, %89, %cst_21 {dimension_numbers = #tpu.dot_dimension_numbers<[1], [0], [0], [1], [0, 0, 1, 1], [], []>} : vector<40x8xbf16>, vector<8x128xbf16>, vector<40x128xf32> -> vector<40x128xf32>
    %c0_22 = arith.constant 0 : index
    %c0_23 = arith.constant 0 : index
    %c0_24 = arith.constant 0 : index
    %91 = vector.load %arg5[%c0_22, %c0_23, %c0_24] : memref<2x40x1xf32, #tpu.memory_space<vmem>>, vector<1x40x1xf32>
    %92 = vector.shape_cast %91 : vector<1x40x1xf32> to vector<40x1xf32>
    %93 = vector.broadcast %92 : vector<40x1xf32> to vector<40x128xf32>
    %94 = arith.addf %90, %93 : vector<40x128xf32>
    %95 = arith.addf %0, %94 : vector<40x128xf32>
    %96 = arith.truncf %95 : vector<40x128xf32> to vector<40x128xbf16>
    %c1 = arith.constant 1 : index
    %c0_25 = arith.constant 0 : index
    %c0_26 = arith.constant 0 : index
    %97 = vector.load %arg2[%c1, %c0_25, %c0_26] : memref<2x24x40xbf16, #tpu.memory_space<vmem>>, vector<1x24x40xbf16>
    %98 = vector.shape_cast %97 : vector<1x24x40xbf16> to vector<24x40xbf16>
    %cst_27 = arith.constant dense<0.000000e+00> : vector<24x128xf32>
    %99 = tpu.matmul %98, %96, %cst_27 {dimension_numbers = #tpu.dot_dimension_numbers<[1], [0], [0], [1], [0, 0, 1, 1], [], []>} : vector<24x40xbf16>, vector<40x128xbf16>, vector<24x128xf32> -> vector<24x128xf32>
    %100 = arith.negf %99 : vector<24x128xf32>
    %101 = math.exp %100 : vector<24x128xf32>
    %cst_28 = arith.constant 1.000000e+00 : f32
    %102 = vector.broadcast %cst_28 : f32 to vector<24x128xf32>
    %103 = arith.addf %102, %101 : vector<24x128xf32>
    %104 = arith.divf %102, %103 : vector<24x128xf32>
    %c1_29 = arith.constant 1 : index
    %c0_30 = arith.constant 0 : index
    %c0_31 = arith.constant 0 : index
    %105 = vector.load %arg6[%c1_29, %c0_30, %c0_31] : memref<2x8x11xf32, #tpu.memory_space<vmem>>, vector<1x8x11xf32>
    %106 = vector.shape_cast %105 : vector<1x8x11xf32> to vector<8x11xf32>
    %107 = vector.extract_strided_slice %106 {offsets = [0, 3], sizes = [8, 8], strides = [1, 1]} : vector<8x11xf32> to vector<8x8xf32>
    %108 = vector.extract_strided_slice %104 {offsets = [16, 0], sizes = [8, 128], strides = [1, 1]} : vector<24x128xf32> to vector<8x128xf32>
    %cst_32 = arith.constant 1.000000e+00 : f32
    %109 = vector.broadcast %cst_32 : f32 to vector<8x128xf32>
    %110 = arith.subf %109, %108 : vector<8x128xf32>
    %111 = vector.extract_strided_slice %107 {offsets = [0, 0], sizes = [8, 1], strides = [1, 1]} : vector<8x8xf32> to vector<8x1xf32>
    %112 = vector.broadcast %111 : vector<8x1xf32> to vector<8x128xf32>
    %113 = arith.mulf %110, %112 : vector<8x128xf32>
    %114 = vector.extract_strided_slice %107 {offsets = [0, 1], sizes = [8, 1], strides = [1, 1]} : vector<8x8xf32> to vector<8x1xf32>
    %115 = vector.broadcast %114 : vector<8x1xf32> to vector<8x128xf32>
    %116 = arith.mulf %108, %115 : vector<8x128xf32>
    %117 = arith.addf %113, %116 : vector<8x128xf32>
    %118 = vector.extract_strided_slice %107 {offsets = [0, 2], sizes = [8, 1], strides = [1, 1]} : vector<8x8xf32> to vector<8x1xf32>
    %119 = vector.broadcast %118 : vector<8x1xf32> to vector<8x128xf32>
    %120 = arith.mulf %110, %119 : vector<8x128xf32>
    %121 = vector.extract_strided_slice %107 {offsets = [0, 3], sizes = [8, 1], strides = [1, 1]} : vector<8x8xf32> to vector<8x1xf32>
    %122 = vector.broadcast %121 : vector<8x1xf32> to vector<8x128xf32>
    %123 = arith.mulf %108, %122 : vector<8x128xf32>
    %124 = arith.addf %120, %123 : vector<8x128xf32>
    %125 = vector.extract_strided_slice %107 {offsets = [0, 4], sizes = [8, 1], strides = [1, 1]} : vector<8x8xf32> to vector<8x1xf32>
    %126 = vector.broadcast %125 : vector<8x1xf32> to vector<8x128xf32>
    %127 = arith.mulf %110, %126 : vector<8x128xf32>
    %128 = vector.extract_strided_slice %107 {offsets = [0, 5], sizes = [8, 1], strides = [1, 1]} : vector<8x8xf32> to vector<8x1xf32>
    %129 = vector.broadcast %128 : vector<8x1xf32> to vector<8x128xf32>
    %130 = arith.mulf %108, %129 : vector<8x128xf32>
    %131 = arith.addf %127, %130 : vector<8x128xf32>
    %132 = vector.extract_strided_slice %107 {offsets = [0, 6], sizes = [8, 1], strides = [1, 1]} : vector<8x8xf32> to vector<8x1xf32>
    %133 = vector.broadcast %132 : vector<8x1xf32> to vector<8x128xf32>
    %134 = arith.mulf %110, %133 : vector<8x128xf32>
    %135 = vector.extract_strided_slice %107 {offsets = [0, 7], sizes = [8, 1], strides = [1, 1]} : vector<8x8xf32> to vector<8x1xf32>
    %136 = vector.broadcast %135 : vector<8x1xf32> to vector<8x128xf32>
    %137 = arith.mulf %108, %136 : vector<8x128xf32>
    %138 = arith.addf %134, %137 : vector<8x128xf32>
    %139 = vector.extract_strided_slice %104 {offsets = [8, 0], sizes = [8, 128], strides = [1, 1]} : vector<24x128xf32> to vector<8x128xf32>
    %cst_33 = arith.constant 1.000000e+00 : f32
    %140 = vector.broadcast %cst_33 : f32 to vector<8x128xf32>
    %141 = arith.subf %140, %139 : vector<8x128xf32>
    %142 = arith.mulf %141, %117 : vector<8x128xf32>
    %143 = arith.mulf %139, %124 : vector<8x128xf32>
    %144 = arith.addf %142, %143 : vector<8x128xf32>
    %145 = arith.mulf %141, %131 : vector<8x128xf32>
    %146 = arith.mulf %139, %138 : vector<8x128xf32>
    %147 = arith.addf %145, %146 : vector<8x128xf32>
    %148 = vector.extract_strided_slice %104 {offsets = [0, 0], sizes = [8, 128], strides = [1, 1]} : vector<24x128xf32> to vector<8x128xf32>
    %cst_34 = arith.constant 1.000000e+00 : f32
    %149 = vector.broadcast %cst_34 : f32 to vector<8x128xf32>
    %150 = arith.subf %149, %148 : vector<8x128xf32>
    %151 = arith.mulf %150, %144 : vector<8x128xf32>
    %152 = arith.mulf %148, %147 : vector<8x128xf32>
    %153 = arith.addf %151, %152 : vector<8x128xf32>
    %c1_35 = arith.constant 1 : index
    %c0_36 = arith.constant 0 : index
    %c0_37 = arith.constant 0 : index
    %154 = vector.load %arg3[%c1_35, %c0_36, %c0_37] : memref<2x8x8xbf16, #tpu.memory_space<vmem>>, vector<1x8x8xbf16>
    %155 = vector.shape_cast %154 : vector<1x8x8xbf16> to vector<8x8xbf16>
    %156 = arith.truncf %153 : vector<8x128xf32> to vector<8x128xbf16>
    %cst_38 = arith.constant dense<0.000000e+00> : vector<8x128xf32>
    %157 = tpu.matmul %155, %156, %cst_38 {dimension_numbers = #tpu.dot_dimension_numbers<[1], [0], [0], [1], [0, 0, 1, 1], [], []>} : vector<8x8xbf16>, vector<8x128xbf16>, vector<8x128xf32> -> vector<8x128xf32>
    %158 = vector.extract_strided_slice %106 {offsets = [0, 0], sizes = [8, 1], strides = [1, 1]} : vector<8x11xf32> to vector<8x1xf32>
    %159 = vector.broadcast %158 : vector<8x1xf32> to vector<8x128xf32>
    %160 = arith.addf %157, %159 : vector<8x128xf32>
    %cst_39 = arith.constant dense<0xFF800000> : vector<128xf32>
    %161 = vector.multi_reduction <maximumf>, %160, %cst_39 [0] : vector<8x128xf32> to vector<128xf32>
    %162 = vector.shape_cast %161 : vector<128xf32> to vector<1x128xf32>
    %163 = vector.broadcast %162 : vector<1x128xf32> to vector<8x128xf32>
    %164 = arith.subf %160, %163 : vector<8x128xf32>
    %165 = math.exp %164 : vector<8x128xf32>
    %cst_40 = arith.constant dense<0.000000e+00> : vector<128xf32>
    %166 = vector.multi_reduction <add>, %165, %cst_40 [0] : vector<8x128xf32> to vector<128xf32>
    %167 = vector.shape_cast %166 : vector<128xf32> to vector<1x128xf32>
    %168 = tpu.reciprocal %167 {approx = true} : vector<1x128xf32> -> vector<1x128xf32>
    %169 = arith.mulf %167, %168 : vector<1x128xf32>
    %cst_41 = arith.constant 2.000000e+00 : f32
    %170 = vector.broadcast %cst_41 : f32 to vector<1x128xf32>
    %171 = arith.subf %170, %169 : vector<1x128xf32>
    %172 = arith.mulf %168, %171 : vector<1x128xf32>
    %173 = vector.broadcast %172 : vector<1x128xf32> to vector<8x128xf32>
    %174 = arith.mulf %165, %173 : vector<8x128xf32>
    %175 = arith.mulf %153, %174 : vector<8x128xf32>
    %176 = vector.extract_strided_slice %106 {offsets = [0, 1], sizes = [8, 1], strides = [1, 1]} : vector<8x11xf32> to vector<8x1xf32>
    %177 = vector.broadcast %176 : vector<8x1xf32> to vector<8x128xf32>
    %178 = arith.mulf %175, %177 : vector<8x128xf32>
    %179 = vector.extract_strided_slice %106 {offsets = [0, 2], sizes = [8, 1], strides = [1, 1]} : vector<8x11xf32> to vector<8x1xf32>
    %180 = vector.broadcast %179 : vector<8x1xf32> to vector<8x128xf32>
    %181 = arith.addf %178, %180 : vector<8x128xf32>
    %c1_42 = arith.constant 1 : index
    %c0_43 = arith.constant 0 : index
    %c0_44 = arith.constant 0 : index
    %182 = vector.load %arg4[%c1_42, %c0_43, %c0_44] : memref<2x40x8xbf16, #tpu.memory_space<vmem>>, vector<1x40x8xbf16>
    %183 = vector.shape_cast %182 : vector<1x40x8xbf16> to vector<40x8xbf16>
    %184 = arith.truncf %181 : vector<8x128xf32> to vector<8x128xbf16>
    %cst_45 = arith.constant dense<0.000000e+00> : vector<40x128xf32>
    %185 = tpu.matmul %183, %184, %cst_45 {dimension_numbers = #tpu.dot_dimension_numbers<[1], [0], [0], [1], [0, 0, 1, 1], [], []>} : vector<40x8xbf16>, vector<8x128xbf16>, vector<40x128xf32> -> vector<40x128xf32>
    %c1_46 = arith.constant 1 : index
    %c0_47 = arith.constant 0 : index
    %c0_48 = arith.constant 0 : index
    %186 = vector.load %arg5[%c1_46, %c0_47, %c0_48] : memref<2x40x1xf32, #tpu.memory_space<vmem>>, vector<1x40x1xf32>
    %187 = vector.shape_cast %186 : vector<1x40x1xf32> to vector<40x1xf32>
    %188 = vector.broadcast %187 : vector<40x1xf32> to vector<40x128xf32>
    %189 = arith.addf %185, %188 : vector<40x128xf32>
    %190 = arith.addf %95, %189 : vector<40x128xf32>
    %c0_49 = arith.constant 0 : index
    %c0_50 = arith.constant 0 : index
    %191 = vector.load %arg7[%c0_49, %c0_50] : memref<8x40xbf16, #tpu.memory_space<vmem>>, vector<8x40xbf16>
    %192 = arith.truncf %190 : vector<40x128xf32> to vector<40x128xbf16>
    %cst_51 = arith.constant dense<0.000000e+00> : vector<8x128xf32>
    %193 = tpu.matmul %191, %192, %cst_51 {dimension_numbers = #tpu.dot_dimension_numbers<[1], [0], [0], [1], [0, 0, 1, 1], [], []>} : vector<8x40xbf16>, vector<40x128xbf16>, vector<8x128xf32> -> vector<8x128xf32>
    %c0_52 = arith.constant 0 : index
    %c0_53 = arith.constant 0 : index
    %194 = vector.load %arg8[%c0_52, %c0_53] : memref<8x128xf32, #tpu.memory_space<vmem>>, vector<8x128xf32>
    tpu.vector_store %arg8[%c0_52, %c0_53], %193 {strides = array<i32>} : memref<8x128xf32, #tpu.memory_space<vmem>>, vector<8x128xf32>,
    return
  }
  func.func @transform_0(%arg0: i32) -> (i32, i32) {
    %c0_i32 = arith.constant 0 : i32
    %c0_i32_0 = arith.constant 0 : i32
    return %c0_i32, %arg0 : i32, i32
  }
  func.func @transform_1(%arg0: i32) -> (i32, i32, i32) {
    %c0_i32 = arith.constant 0 : i32
    %c0_i32_0 = arith.constant 0 : i32
    %c0_i32_1 = arith.constant 0 : i32
    %c0_i32_2 = arith.constant 0 : i32
    return %c0_i32, %c0_i32_0, %c0_i32_1 : i32, i32, i32
  }
  func.func @transform_2(%arg0: i32) -> (i32, i32, i32) {
    %c0_i32 = arith.constant 0 : i32
    %c0_i32_0 = arith.constant 0 : i32
    %c0_i32_1 = arith.constant 0 : i32
    %c0_i32_2 = arith.constant 0 : i32
    return %c0_i32, %c0_i32_0, %c0_i32_1 : i32, i32, i32
  }
  func.func @transform_3(%arg0: i32) -> (i32, i32, i32) {
    %c0_i32 = arith.constant 0 : i32
    %c0_i32_0 = arith.constant 0 : i32
    %c0_i32_1 = arith.constant 0 : i32
    %c0_i32_2 = arith.constant 0 : i32
    return %c0_i32, %c0_i32_0, %c0_i32_1 : i32, i32, i32
  }
  func.func @transform_4(%arg0: i32) -> (i32, i32, i32) {
    %c0_i32 = arith.constant 0 : i32
    %c0_i32_0 = arith.constant 0 : i32
    %c0_i32_1 = arith.constant 0 : i32
    %c0_i32_2 = arith.constant 0 : i32
    return %c0_i32, %c0_i32_0, %c0_i32_1 : i32, i32, i32
  }
  func.func @transform_5(%arg0: i32) -> (i32, i32, i32) {
    %c0_i32 = arith.constant 0 : i32
    %c0_i32_0 = arith.constant 0 : i32
    %c0_i32_1 = arith.constant 0 : i32
    %c0_i32_2 = arith.constant 0 : i32
    return %c0_i32, %c0_i32_0, %c0_i32_1 : i32, i32, i32
  }
  func.func @transform_6(%arg0: i32) -> (i32, i32) {
    %c0_i32 = arith.constant 0 : i32
    %c0_i32_0 = arith.constant 0 : i32
    %c0_i32_1 = arith.constant 0 : i32
    return %c0_i32, %c0_i32_0 : i32, i32
  }
  func.func @transform_7(%arg0: i32) -> (i32, i32) {
    %c0_i32 = arith.constant 0 : i32
    %c0_i32_0 = arith.constant 0 : i32
    return %c0_i32, %arg0 : i32, i32
  }
}

</mosaic_0001>

<llo_original>
// kernel: tpu_custom_call.1
$region0: #{tpu_custom_call.1}
  #allocation0 [shape = 'u32[]', space=smem, size = 0x4, offset = 0x4, fixed_abs, tag = 'smem constant byte address 0x4 - core index']
  #allocation1 [shape = 'u32[144,128]{1,0:T(1,128)}', space=vmem, size = 0x12000, scoped, tag = 'internal scratch']
  %s0 = inlined_call_operand.vmem [shape: f32[40,128], index: 0, kind: input, shape index: {}]
  %s1 = inlined_call_operand.vmem [shape: bf16[2,24,40], index: 1, kind: input, shape index: {}]
  %s2 = inlined_call_operand.vmem [shape: bf16[2,8,8], index: 2, kind: input, shape index: {}]
  %s3 = inlined_call_operand.vmem [shape: bf16[2,40,8], index: 3, kind: input, shape index: {}]
  %s4 = inlined_call_operand.vmem [shape: f32[2,40,1], index: 4, kind: input, shape index: {}]
  %s5 = inlined_call_operand.vmem [shape: f32[2,8,11], index: 5, kind: input, shape index: {}]
  %s6 = inlined_call_operand.vmem [shape: bf16[8,40], index: 6, kind: input, shape index: {}]
  %s7 = inlined_call_operand.hbm [shape: f32[8,128], index: 7, kind: output, shape index: {}]
  %s8 = sld [smem:[#allocation0]]
  $region38: #{tpu_custom_call.1} parent=0
    _
  %s10 = ssub.s32 1, %s8
  %s11 = scalar_select 0, %s10, %s8
  $region1: #{tpu_custom_call.1} parent=0
    #allocation2 [shape = 'u8[4096]{0}', space=vmem, size = 0x1000, scoped, tag = 'output window, operand 0, single buffered']
    #allocation3 [shape = 's32[1]{0}', space=sflag, size = 0x4, scoped, tag = 'scoped memory for tpu_custom_call.1']
    %12 = vsyncpa [#allocation3], 0
    // Predicated region
    $region2: #{tpu_custom_call.1} parent=1 // pred_check
      _
    $region3: #{tpu_custom_call.1} parent=1 // pred_check_branch
      %14 = sbr.rel (0) target = $region5
    $region4: #{tpu_custom_call.1} parent=1 // pred_region
      _
    $region5: #{tpu_custom_call.1} parent=1 // pred_fallthru
      _
    // Predicated region
    $region6: #{tpu_custom_call.1} parent=1 // pred_check
      _
    $region7: #{tpu_custom_call.1} parent=1 // pred_check_branch
      %16 = sbr.rel (0) target = $region9
    $region8: #{tpu_custom_call.1} parent=1 // pred_region
      _
    $region9: #{tpu_custom_call.1} parent=1 // pred_fallthru
      _
    // Predicated region
    $region10: #{tpu_custom_call.1} parent=1 // pred_check
      _
    $region11: #{tpu_custom_call.1} parent=1 // pred_check_branch
      %18 = sbr.rel (0) target = $region13
    $region12: #{tpu_custom_call.1} parent=1 // pred_region
      _
    $region13: #{tpu_custom_call.1} parent=1 // pred_fallthru
      _
    // Predicated region
    $region14: #{tpu_custom_call.1} parent=1 // pred_check
      _
    $region15: #{tpu_custom_call.1} parent=1 // pred_check_branch
      %20 = sbr.rel (0) target = $region17
    $region16: #{tpu_custom_call.1} parent=1 // pred_region
      _
    $region17: #{tpu_custom_call.1} parent=1 // pred_fallthru
      _
    // Predicated region
    $region18: #{tpu_custom_call.1} parent=1 // pred_check
      _
    $region19: #{tpu_custom_call.1} parent=1 // pred_check_branch
      %22 = sbr.rel (0) target = $region21
    $region20: #{tpu_custom_call.1} parent=1 // pred_region
      _
    $region21: #{tpu_custom_call.1} parent=1 // pred_fallthru
      _
    // Predicated region
    $region22: #{tpu_custom_call.1} parent=1 // pred_check
      _
    $region23: #{tpu_custom_call.1} parent=1 // pred_check_branch
      %24 = sbr.rel (0) target = $region25
    $region24: #{tpu_custom_call.1} parent=1 // pred_region
      _
    $region25: #{tpu_custom_call.1} parent=1 // pred_fallthru
      _
    // Predicated region
    $region26: #{tpu_custom_call.1} parent=1 // pred_check
      _
    $region27: #{tpu_custom_call.1} parent=1 // pred_check_branch
      %26 = sbr.rel (0) target = $region29
    $region28: #{tpu_custom_call.1} parent=1 // pred_region
      _
    $region29: #{tpu_custom_call.1} parent=1 // pred_fallthru
      _
    %v28 = vld [vmem:[%s0] sm:$0xff]
    %v29 = vld [vmem:[%s0 + $0x8] sm:$0xff]
    %v30 = vld [vmem:[%s0 + $0x10] sm:$0xff]
    %v31 = vld [vmem:[%s0 + $0x18] sm:$0xff]
    %v32 = vld [vmem:[%s0 + $0x20] sm:$0xff]
    %v33 = vpack.c.bf16 %v29, %v28
    %v34 = vpack.c.bf16 %v31, %v30
    %v35 = vpack.c.bf16 %v32, %v32
    %v36 = vld [vmem:[%s1] sm:$0xf]
    %v37 = vld [vmem:[%s1 + $0x4] sm:$0xf]
    %v38 = vld [vmem:[%s1 + $0x8] sm:$0xf]
    %v42 = vunpack.c.l.b16 %v36
    %v43 = vunpack.c.l.b16 %v37
    %v44 = vunpack.c.l.b16 %v38
    %v45 = vpack.c.b16 %v43, %v42
    %v46 = vpack.c.b16 %v44, %v44
    %vm47 = vcmask 326656
    %v49 = vsel %vm47, %v45, 0
    %v52 = vsel %vm47, %v46, 0
    %vm54 = vcmask 1043456
    %v56 = vsel %vm54, %v35, 0
    %58 = vmatprep.subr.bf16.mxu0 0
    %59 = vmatpush1.bf16.msra.mxu0 %v33
    %60 = vmatprep.subr.bf16.mxu0 0
    %61 = vmatpush1.bf16.msra.mxu0 %v34
    %62 = vmatprep.subr.bf16.mxu0 0
    %63 = vmatpush1.bf16.msra.mxu0 %v56
    %64 = vmatprep.subr.bf16.mxu0 0
    %65 = vmatpush1.bf16.msra.mxu0 0
    %66 = vmatprep.subr.bf16.mxu0 0
    %67 = vmatpush1.bf16.msra.mxu0 0
    %68 = vmatprep.subr.bf16.mxu0 0
    %69 = vmatpush1.bf16.msra.mxu0 0
    %70 = vmatprep.subr.bf16.mxu0 0
    %71 = vmatpush1.bf16.msra.mxu0 0
    %72 = vmatprep.subr.bf16.mxu0 0
    %73 = vmatpush1.bf16.msra.mxu0 0
    %74 = vmatprep.subr.bf16.mxu0 0
    %75 = vmatpush1.bf16.msra.mxu0 0
    %76 = vmatprep.subr.bf16.mxu0 0
    %77 = vmatpush1.bf16.msra.mxu0 0
    %78 = vmatprep.subr.bf16.mxu0 0
    %79 = vmatpush1.bf16.msra.mxu0 0
    %80 = vmatprep.subr.bf16.mxu0 0
    %81 = vmatpush1.bf16.msra.mxu0 0
    %82 = vmatprep.subr.bf16.mxu0 0
    %83 = vmatpush1.bf16.msra.mxu0 0
    %84 = vmatprep.subr.bf16.mxu0 0
    %85 = vmatpush1.bf16.msra.mxu0 0
    %86 = vmatprep.subr.bf16.mxu0 0
    %87 = vmatpush1.bf16.msra.mxu0 0
    %88 = vmatprep.subr.bf16.mxu0 0
    %89 = vmatpush1.bf16.msra.mxu0 0
    %90 = vmatprep.mubr.bf16.mxu0 0
    %91 = vmatmul.mubr.bf16.gmra.mrb[0].mxu0 %v49
    %v92 = vpop.f32.mrb[0].mxu0
    %v93 = vadd.f32 0.0, %v92
    %v94 = vpop.f32.mrb[0].mxu0
    %v95 = vpop.f32.mrb[0].mxu0
    %v96 = vadd.f32 0.0, %v95
    %v97 = vpop.f32.mrb[0].mxu0
    %98 = vmatprep.mubr.bf16.mxu0 0
    %99 = vmatmul.mubr.bf16.gmra.mrb[0].mxu0 %v52
    %v100 = vpop.f32.mrb[0].mxu0
    %v101 = vadd.f32 0.0, %v100
    %v102 = vpop.f32.mrb[0].mxu0
    %v103 = vpop.f32.mrb[0].mxu0
    %v104 = vpop.f32.mrb[0].mxu0
    %105 = vdwg.mxu0
    %v106 = vxor.u32 %v93, 2147483648
    %v107 = vxor.u32 %v96, 2147483648
    %v108 = vxor.u32 %v101, 2147483648
    %v109 = vmul.f32 %v106, 1.442695
    %v110 = vpow.pop %v109
    %v111 = vmul.f32 %v107, 1.442695
    %v112 = vpow.pop %v111
    %v113 = vmul.f32 %v108, 1.442695
    %v114 = vpow.pop %v113
    %v115 = vadd.f32 %v110, 1.0
    %v116 = vadd.f32 %v112, 1.0
    %v117 = vadd.f32 %v114, 1.0
    %v118 = vrcp.pop %v115
    %v119 = vmul.f32 1.0, %v118
    %v120 = vrcp.pop %v116
    %v121 = vmul.f32 1.0, %v120
    %v122 = vrcp.pop %v117
    %v123 = vmul.f32 1.0, %v122
    %v124 = vld [vmem:[%s5] sm:$0xff]
    %v125 = vsub.f32 1.0, %v123
    %127 = vset.pattern.permute.xlu0 3
    %128 = vperm.xlu0 %127, %v124
    %v129 = vpop.permute.xlu0 %128
    %v131 = vmul.f32 %v125, %v129
    %132 = vset.pattern.permute.xlu0 4
    %133 = vperm.xlu0 %132, %v124
    %v134 = vpop.permute.xlu0 %133
    %v136 = vmul.f32 %v123, %v134
    %v137 = vadd.f32 %v131, %v136
    %138 = vset.pattern.permute.xlu0 5
    %139 = vperm.xlu0 %138, %v124
    %v140 = vpop.permute.xlu0 %139
    %v142 = vmul.f32 %v125, %v140
    %143 = vset.pattern.permute.xlu0 6
    %144 = vperm.xlu0 %143, %v124
    %v145 = vpop.permute.xlu0 %144
    %v147 = vmul.f32 %v123, %v145
    %v148 = vadd.f32 %v142, %v147
    %149 = vset.pattern.permute.xlu0 7
    %150 = vperm.xlu0 %149, %v124
    %v151 = vpop.permute.xlu0 %150
    %v153 = vmul.f32 %v125, %v151
    %154 = vset.pattern.permute.xlu0 8
    %155 = vperm.xlu0 %154, %v124
    %v156 = vpop.permute.xlu0 %155
    %v158 = vmul.f32 %v123, %v156
    %v159 = vadd.f32 %v153, %v158
    %160 = vset.pattern.permute.xlu0 9
    %161 = vperm.xlu0 %160, %v124
    %v162 = vpop.permute.xlu0 %161
    %v164 = vmul.f32 %v125, %v162
    %165 = vset.pattern.permute.xlu0 10
    %166 = vperm.xlu0 %165, %v124
    %v167 = vpop.permute.xlu0 %166
    %v169 = vmul.f32 %v123, %v167
    %v170 = vadd.f32 %v164, %v169
    %v171 = vsub.f32 1.0, %v121
    %v172 = vmul.f32 %v171, %v137
    %v173 = vmul.f32 %v121, %v148
    %v174 = vadd.f32 %v172, %v173
    %v175 = vmul.f32 %v171, %v159
    %v176 = vmul.f32 %v121, %v170
    %v177 = vadd.f32 %v175, %v176
    %v178 = vsub.f32 1.0, %v119
    %v179 = vmul.f32 %v178, %v174
    %v180 = vmul.f32 %v119, %v177
    %v181 = vadd.f32 %v179, %v180
    %v182 = vld [vmem:[%s2] sm:$0xf]
    %v183 = vpack.c.bf16 %v181, %v181
    %184 = vset.pattern.permute.xlu0 0
    %185 = vperm.xlu0 %184, %v124
    %v186 = vpop.permute.xlu0 %185
    %vm188 = vcmask 64512
    %v190 = vsel %vm188, %v182, 0
    %v193 = vsel %vm54, %v183, 0
    %195 = vmatprep.subr.bf16.mxu0 0
    %196 = vmatpush1.bf16.msra.mxu0 %v193
    %197 = vmatprep.subr.bf16.mxu0 0
    %198 = vmatpush1.bf16.msra.mxu0 0
    %199 = vmatprep.subr.bf16.mxu0 0
    %200 = vmatpush1.bf16.msra.mxu0 0
    %201 = vmatprep.subr.bf16.mxu0 0
    %202 = vmatpush1.bf16.msra.mxu0 0
    %203 = vmatprep.subr.bf16.mxu0 0
    %204 = vmatpush1.bf16.msra.mxu0 0
    %205 = vmatprep.subr.bf16.mxu0 0
    %206 = vmatpush1.bf16.msra.mxu0 0
    %207 = vmatprep.subr.bf16.mxu0 0
    %208 = vmatpush1.bf16.msra.mxu0 0
    %209 = vmatprep.subr.bf16.mxu0 0
    %210 = vmatpush1.bf16.msra.mxu0 0
    %211 = vmatprep.subr.bf16.mxu0 0
    %212 = vmatpush1.bf16.msra.mxu0 0
    %213 = vmatprep.subr.bf16.mxu0 0
    %214 = vmatpush1.bf16.msra.mxu0 0
    %215 = vmatprep.subr.bf16.mxu0 0
    %216 = vmatpush1.bf16.msra.mxu0 0
    %217 = vmatprep.subr.bf16.mxu0 0
    %218 = vmatpush1.bf16.msra.mxu0 0
    %219 = vmatprep.subr.bf16.mxu0 0
    %220 = vmatpush1.bf16.msra.mxu0 0
    %221 = vmatprep.subr.bf16.mxu0 0
    %222 = vmatpush1.bf16.msra.mxu0 0
    %223 = vmatprep.subr.bf16.mxu0 0
    %224 = vmatpush1.bf16.msra.mxu0 0
    %225 = vmatprep.subr.bf16.mxu0 0
    %226 = vmatpush1.bf16.msra.mxu0 0
    %227 = vmatprep.mubr.bf16.mxu0 0
    %228 = vmatmul.mubr.bf16.gmra.mrb[0].mxu0 %v190
    %v229 = vpop.f32.mrb[0].mxu0
    %v230 = vadd.f32 %v186, %v229
    %v231 = vpop.f32.mrb[0].mxu0
    %v232 = vpop.f32.mrb[0].mxu0
    %v233 = vpop.f32.mrb[0].mxu0
    %234 = vdwg.mxu0
    %v235 = vrot.slane %v230, 4
    %v236 = vmax.f32 %v230, %v235
    %v237 = vrot.slane %v236, 2
    %v238 = vmax.f32 %v236, %v237
    %v239 = vrot.slane %v238, 1
    %v240 = vmax.f32 %v238, %v239
    %v241 = vsub.f32 %v230, %v240
    %v242 = vmul.f32 %v241, 1.442695
    %v243 = vpow.pop %v242
    %v244 = vrot.slane %v243, 4
    %v245 = vadd.f32 %v243, %v244
    %v246 = vrot.slane %v245, 2
    %v247 = vadd.f32 %v245, %v246
    %v248 = vrot.slane %v247, 1
    %v249 = vadd.f32 %v247, %v248
    %v250 = vrcp.pop %v249
    %v251 = vmul.f32 %v249, %v250
    %v252 = vsub.f32 2.0, %v251
    %v253 = vmul.f32 %v250, %v252
    %v254 = vmul.f32 %v243, %v253
    %v255 = vmul.f32 %v181, %v254
    %256 = vset.pattern.permute.xlu0 1
    %257 = vperm.xlu0 %256, %v124
    %v258 = vpop.permute.xlu0 %257
    %v260 = vmul.f32 %v255, %v258
    %261 = vset.pattern.permute.xlu0 2
    %262 = vperm.xlu0 %261, %v124
    %v263 = vpop.permute.xlu0 %262
    %v265 = vadd.f32 %v260, %v263
    %v266 = vld [vmem:[%s3] sm:$0xf]
    %v267 = vld [vmem:[%s3 + $0x4] sm:$0xf]
    %v268 = vld [vmem:[%s3 + $0x8] sm:$0xf]
    %v269 = vld [vmem:[%s3 + $0xc] sm:$0xf]
    %v270 = vld [vmem:[%s3 + $0x10] sm:$0xf]
    %v271 = vpack.c.bf16 %v265, %v265
    %v272 = vld [vmem:[%s4] sm:$0xff]
    %v273 = vld [vmem:[%s4 + $0x8] sm:$0xff]
    %v274 = vld [vmem:[%s4 + $0x10] sm:$0xff]
    %v275 = vld [vmem:[%s4 + $0x18] sm:$0xff]
    %v276 = vld [vmem:[%s4 + $0x20] sm:$0xff]
    %278 = vset.pattern.permute.xlu0 0
    %279 = vperm.xlu0 %278, %v272
    %v280 = vpop.permute.xlu0 %279
    %283 = vset.pattern.permute.xlu0 0
    %284 = vperm.xlu0 %283, %v273
    %v285 = vpop.permute.xlu0 %284
    %288 = vset.pattern.permute.xlu0 0
    %289 = vperm.xlu0 %288, %v274
    %v290 = vpop.permute.xlu0 %289
    %293 = vset.pattern.permute.xlu0 0
    %294 = vperm.xlu0 %293, %v275
    %v295 = vpop.permute.xlu0 %294
    %298 = vset.pattern.permute.xlu0 0
    %299 = vperm.xlu0 %298, %v276
    %v300 = vpop.permute.xlu0 %299
    %v307 = vunpack.c.l.b16 %v266
    %v308 = vunpack.c.l.b16 %v267
    %v309 = vunpack.c.l.b16 %v268
    %v310 = vunpack.c.l.b16 %v269
    %v311 = vunpack.c.l.b16 %v270
    %v312 = vpack.c.b16 %v308, %v307
    %v313 = vpack.c.b16 %v310, %v309
    %v314 = vpack.c.b16 %v311, %v311
    %v316 = vsel %vm188, %v312, 0
    %v319 = vsel %vm188, %v313, 0
    %v322 = vsel %vm188, %v314, 0
    %v325 = vsel %vm54, %v271, 0
    %327 = vmatprep.subr.bf16.mxu0 0
    %328 = vmatpush1.bf16.msra.mxu0 %v325
    %329 = vmatprep.subr.bf16.mxu0 0
    %330 = vmatpush1.bf16.msra.mxu0 0
    %331 = vmatprep.subr.bf16.mxu0 0
    %332 = vmatpush1.bf16.msra.mxu0 0
    %333 = vmatprep.subr.bf16.mxu0 0
    %334 = vmatpush1.bf16.msra.mxu0 0
    %335 = vmatprep.subr.bf16.mxu0 0
    %336 = vmatpush1.bf16.msra.mxu0 0
    %337 = vmatprep.subr.bf16.mxu0 0
    %338 = vmatpush1.bf16.msra.mxu0 0
    %339 = vmatprep.subr.bf16.mxu0 0
    %340 = vmatpush1.bf16.msra.mxu0 0
    %341 = vmatprep.subr.bf16.mxu0 0
    %342 = vmatpush1.bf16.msra.mxu0 0
    %343 = vmatprep.subr.bf16.mxu0 0
    %344 = vmatpush1.bf16.msra.mxu0 0
    %345 = vmatprep.subr.bf16.mxu0 0
    %346 = vmatpush1.bf16.msra.mxu0 0
    %347 = vmatprep.subr.bf16.mxu0 0
    %348 = vmatpush1.bf16.msra.mxu0 0
    %349 = vmatprep.subr.bf16.mxu0 0
    %350 = vmatpush1.bf16.msra.mxu0 0
    %351 = vmatprep.subr.bf16.mxu0 0
    %352 = vmatpush1.bf16.msra.mxu0 0
    %353 = vmatprep.subr.bf16.mxu0 0
    %354 = vmatpush1.bf16.msra.mxu0 0
    %355 = vmatprep.subr.bf16.mxu0 0
    %356 = vmatpush1.bf16.msra.mxu0 0
    %357 = vmatprep.subr.bf16.mxu0 0
    %358 = vmatpush1.bf16.msra.mxu0 0
    %359 = vmatprep.mubr.bf16.mxu0 0
    %360 = vmatmul.mubr.bf16.gmra.mrb[0].mxu0 %v316
    %v361 = vpop.f32.mrb[0].mxu0
    %v362 = vadd.f32 %v280, %v361
    %v363 = vpop.f32.mrb[0].mxu0
    %v364 = vpop.f32.mrb[0].mxu0
    %v365 = vadd.f32 %v285, %v364
    %v366 = vpop.f32.mrb[0].mxu0
    %367 = vmatprep.mubr.bf16.mxu0 0
    %368 = vmatmul.mubr.bf16.gmra.mrb[0].mxu0 %v319
    %v369 = vpop.f32.mrb[0].mxu0
    %v370 = vadd.f32 %v290, %v369
    %v371 = vpop.f32.mrb[0].mxu0
    %v372 = vpop.f32.mrb[0].mxu0
    %v373 = vadd.f32 %v295, %v372
    %v374 = vpop.f32.mrb[0].mxu0
    %375 = vmatprep.mubr.bf16.mxu0 0
    %376 = vmatmul.mubr.bf16.gmra.mrb[0].mxu0 %v322
    %v377 = vpop.f32.mrb[0].mxu0
    %v378 = vadd.f32 %v300, %v377
    %v379 = vpop.f32.mrb[0].mxu0
    %v380 = vpop.f32.mrb[0].mxu0
    %v381 = vpop.f32.mrb[0].mxu0
    %382 = vdwg.mxu0
    %v383 = vadd.f32 %v28, %v362
    %v384 = vadd.f32 %v29, %v365
    %v385 = vadd.f32 %v30, %v370
    %v386 = vadd.f32 %v31, %v373
    %v387 = vadd.f32 %v32, %v378
    %v388 = vpack.c.bf16 %v384, %v383
    %v389 = vpack.c.bf16 %v386, %v385
    %v390 = vpack.c.bf16 %v387, %v387
    %s391 = scalar_lea.vmem %s1, 12
    %v392 = vld [vmem:[%s391] sm:$0xf]
    %v393 = vld [vmem:[%s391 + $0x4] sm:$0xf]
    %v394 = vld [vmem:[%s391 + $0x8] sm:$0xf]
    %v398 = vunpack.c.l.b16 %v392
    %v399 = vunpack.c.l.b16 %v393
    %v400 = vunpack.c.l.b16 %v394
    %v401 = vpack.c.b16 %v399, %v398
    %v402 = vpack.c.b16 %v400, %v400
    %v404 = vsel %vm47, %v401, 0
    %v407 = vsel %vm47, %v402, 0
    %v410 = vsel %vm54, %v390, 0
    %412 = vmatprep.subr.bf16.mxu0 0
    %413 = vmatpush1.bf16.msra.mxu0 %v388
    %414 = vmatprep.subr.bf16.mxu0 0
    %415 = vmatpush1.bf16.msra.mxu0 %v389
    %416 = vmatprep.subr.bf16.mxu0 0
    %417 = vmatpush1.bf16.msra.mxu0 %v410
    %418 = vmatprep.subr.bf16.mxu0 0
    %419 = vmatpush1.bf16.msra.mxu0 0
    %420 = vmatprep.subr.bf16.mxu0 0
    %421 = vmatpush1.bf16.msra.mxu0 0
    %422 = vmatprep.subr.bf16.mxu0 0
    %423 = vmatpush1.bf16.msra.mxu0 0
    %424 = vmatprep.subr.bf16.mxu0 0
    %425 = vmatpush1.bf16.msra.mxu0 0
    %426 = vmatprep.subr.bf16.mxu0 0
    %427 = vmatpush1.bf16.msra.mxu0 0
    %428 = vmatprep.subr.bf16.mxu0 0
    %429 = vmatpush1.bf16.msra.mxu0 0
    %430 = vmatprep.subr.bf16.mxu0 0
    %431 = vmatpush1.bf16.msra.mxu0 0
    %432 = vmatprep.subr.bf16.mxu0 0
    %433 = vmatpush1.bf16.msra.mxu0 0
    %434 = vmatprep.subr.bf16.mxu0 0
    %435 = vmatpush1.bf16.msra.mxu0 0
    %436 = vmatprep.subr.bf16.mxu0 0
    %437 = vmatpush1.bf16.msra.mxu0 0
    %438 = vmatprep.subr.bf16.mxu0 0
    %439 = vmatpush1.bf16.msra.mxu0 0
    %440 = vmatprep.subr.bf16.mxu0 0
    %441 = vmatpush1.bf16.msra.mxu0 0
    %442 = vmatprep.subr.bf16.mxu0 0
    %443 = vmatpush1.bf16.msra.mxu0 0
    %444 = vmatprep.mubr.bf16.mxu0 0
    %445 = vmatmul.mubr.bf16.gmra.mrb[0].mxu0 %v404
    %v446 = vpop.f32.mrb[0].mxu0
    %v447 = vadd.f32 0.0, %v446
    %v448 = vpop.f32.mrb[0].mxu0
    %v449 = vpop.f32.mrb[0].mxu0
    %v450 = vadd.f32 0.0, %v449
    %v451 = vpop.f32.mrb[0].mxu0
    %452 = vmatprep.mubr.bf16.mxu0 0
    %453 = vmatmul.mubr.bf16.gmra.mrb[0].mxu0 %v407
    %v454 = vpop.f32.mrb[0].mxu0
    %v455 = vadd.f32 0.0, %v454
    %v456 = vpop.f32.mrb[0].mxu0
    %v457 = vpop.f32.mrb[0].mxu0
    %v458 = vpop.f32.mrb[0].mxu0
    %459 = vdwg.mxu0
    %v460 = vxor.u32 %v447, 2147483648
    %v461 = vxor.u32 %v450, 2147483648
    %v462 = vxor.u32 %v455, 2147483648
    %v463 = vmul.f32 %v460, 1.442695
    %v464 = vpow.pop %v463
    %v465 = vmul.f32 %v461, 1.442695
    %v466 = vpow.pop %v465
    %v467 = vmul.f32 %v462, 1.442695
    %v468 = vpow.pop %v467
    %v469 = vadd.f32 %v464, 1.0
    %v470 = vadd.f32 %v466, 1.0
    %v471 = vadd.f32 %v468, 1.0
    %v472 = vrcp.pop %v469
    %v473 = vmul.f32 1.0, %v472
    %v474 = vrcp.pop %v470
    %v475 = vmul.f32 1.0, %v474
    %v476 = vrcp.pop %v471
    %v477 = vmul.f32 1.0, %v476
    %s478 = scalar_lea.vmem %s5, 8
    %v479 = vld [vmem:[%s478] sm:$0xff]
    %v480 = vsub.f32 1.0, %v477
    %482 = vset.pattern.permute.xlu0 3
    %483 = vperm.xlu0 %482, %v479
    %v484 = vpop.permute.xlu0 %483
    %v486 = vmul.f32 %v480, %v484
    %487 = vset.pattern.permute.xlu0 4
    %488 = vperm.xlu0 %487, %v479
    %v489 = vpop.permute.xlu0 %488
    %v491 = vmul.f32 %v477, %v489
    %v492 = vadd.f32 %v486, %v491
    %493 = vset.pattern.permute.xlu0 5
    %494 = vperm.xlu0 %493, %v479
    %v495 = vpop.permute.xlu0 %494
    %v497 = vmul.f32 %v480, %v495
    %498 = vset.pattern.permute.xlu0 6
    %499 = vperm.xlu0 %498, %v479
    %v500 = vpop.permute.xlu0 %499
    %v502 = vmul.f32 %v477, %v500
    %v503 = vadd.f32 %v497, %v502
    %504 = vset.pattern.permute.xlu0 7
    %505 = vperm.xlu0 %504, %v479
    %v506 = vpop.permute.xlu0 %505
    %v508 = vmul.f32 %v480, %v506
    %509 = vset.pattern.permute.xlu0 8
    %510 = vperm.xlu0 %509, %v479
    %v511 = vpop.permute.xlu0 %510
    %v513 = vmul.f32 %v477, %v511
    %v514 = vadd.f32 %v508, %v513
    %515 = vset.pattern.permute.xlu0 9
    %516 = vperm.xlu0 %515, %v479
    %v517 = vpop.permute.xlu0 %516
    %v519 = vmul.f32 %v480, %v517
    %520 = vset.pattern.permute.xlu0 10
    %521 = vperm.xlu0 %520, %v479
    %v522 = vpop.permute.xlu0 %521
    %v524 = vmul.f32 %v477, %v522
    %v525 = vadd.f32 %v519, %v524
    %v526 = vsub.f32 1.0, %v475
    %v527 = vmul.f32 %v526, %v492
    %v528 = vmul.f32 %v475, %v503
    %v529 = vadd.f32 %v527, %v528
    %v530 = vmul.f32 %v526, %v514
    %v531 = vmul.f32 %v475, %v525
    %v532 = vadd.f32 %v530, %v531
    %v533 = vsub.f32 1.0, %v473
    %v534 = vmul.f32 %v533, %v529
    %v535 = vmul.f32 %v473, %v532
    %v536 = vadd.f32 %v534, %v535
    %s537 = scalar_lea.vmem %s2, 4
    %v538 = vld [vmem:[%s537] sm:$0xf]
    %v539 = vpack.c.bf16 %v536, %v536
    %540 = vset.pattern.permute.xlu0 0
    %541 = vperm.xlu0 %540, %v479
    %v542 = vpop.permute.xlu0 %541
    %v545 = vsel %vm188, %v538, 0
    %v548 = vsel %vm54, %v539, 0
    %550 = vmatprep.subr.bf16.mxu0 0
    %551 = vmatpush1.bf16.msra.mxu0 %v548
    %552 = vmatprep.subr.bf16.mxu0 0
    %553 = vmatpush1.bf16.msra.mxu0 0
    %554 = vmatprep.subr.bf16.mxu0 0
    %555 = vmatpush1.bf16.msra.mxu0 0
    %556 = vmatprep.subr.bf16.mxu0 0
    %557 = vmatpush1.bf16.msra.mxu0 0
    %558 = vmatprep.subr.bf16.mxu0 0
    %559 = vmatpush1.bf16.msra.mxu0 0
    %560 = vmatprep.subr.bf16.mxu0 0
    %561 = vmatpush1.bf16.msra.mxu0 0
    %562 = vmatprep.subr.bf16.mxu0 0
    %563 = vmatpush1.bf16.msra.mxu0 0
    %564 = vmatprep.subr.bf16.mxu0 0
    %565 = vmatpush1.bf16.msra.mxu0 0
    %566 = vmatprep.subr.bf16.mxu0 0
    %567 = vmatpush1.bf16.msra.mxu0 0
    %568 = vmatprep.subr.bf16.mxu0 0
    %569 = vmatpush1.bf16.msra.mxu0 0
    %570 = vmatprep.subr.bf16.mxu0 0
    %571 = vmatpush1.bf16.msra.mxu0 0
    %572 = vmatprep.subr.bf16.mxu0 0
    %573 = vmatpush1.bf16.msra.mxu0 0
    %574 = vmatprep.subr.bf16.mxu0 0
    %575 = vmatpush1.bf16.msra.mxu0 0
    %576 = vmatprep.subr.bf16.mxu0 0
    %577 = vmatpush1.bf16.msra.mxu0 0
    %578 = vmatprep.subr.bf16.mxu0 0
    %579 = vmatpush1.bf16.msra.mxu0 0
    %580 = vmatprep.subr.bf16.mxu0 0
    %581 = vmatpush1.bf16.msra.mxu0 0
    %582 = vmatprep.mubr.bf16.mxu0 0
    %583 = vmatmul.mubr.bf16.gmra.mrb[0].mxu0 %v545
    %v584 = vpop.f32.mrb[0].mxu0
    %v585 = vadd.f32 %v542, %v584
    %v586 = vpop.f32.mrb[0].mxu0
    %v587 = vpop.f32.mrb[0].mxu0
    %v588 = vpop.f32.mrb[0].mxu0
    %589 = vdwg.mxu0
    %v590 = vrot.slane %v585, 4
    %v591 = vmax.f32 %v585, %v590
    %v592 = vrot.slane %v591, 2
    %v593 = vmax.f32 %v591, %v592
    %v594 = vrot.slane %v593, 1
    %v595 = vmax.f32 %v593, %v594
    %v596 = vsub.f32 %v585, %v595
    %v597 = vmul.f32 %v596, 1.442695
    %v598 = vpow.pop %v597
    %v599 = vrot.slane %v598, 4
    %v600 = vadd.f32 %v598, %v599
    %v601 = vrot.slane %v600, 2
    %v602 = vadd.f32 %v600, %v601
    %v603 = vrot.slane %v602, 1
    %v604 = vadd.f32 %v602, %v603
    %v605 = vrcp.pop %v604
    %v606 = vmul.f32 %v604, %v605
    %v607 = vsub.f32 2.0, %v606
    %v608 = vmul.f32 %v605, %v607
    %v609 = vmul.f32 %v598, %v608
    %v610 = vmul.f32 %v536, %v609
    %611 = vset.pattern.permute.xlu0 1
    %612 = vperm.xlu0 %611, %v479
    %v613 = vpop.permute.xlu0 %612
    %v615 = vmul.f32 %v610, %v613
    %616 = vset.pattern.permute.xlu0 2
    %617 = vperm.xlu0 %616, %v479
    %v618 = vpop.permute.xlu0 %617
    %v620 = vadd.f32 %v615, %v618
    %s621 = scalar_lea.vmem %s3, 20
    %v622 = vld [vmem:[%s621] sm:$0xf]
    %v623 = vld [vmem:[%s621 + $0x4] sm:$0xf]
    %v624 = vld [vmem:[%s621 + $0x8] sm:$0xf]
    %v625 = vld [vmem:[%s621 + $0xc] sm:$0xf]
    %v626 = vld [vmem:[%s621 + $0x10] sm:$0xf]
    %v627 = vpack.c.bf16 %v620, %v620
    %s628 = scalar_lea.vmem %s4, 40
    %v629 = vld [vmem:[%s628] sm:$0xff]
    %v630 = vld [vmem:[%s628 + $0x8] sm:$0xff]
    %v631 = vld [vmem:[%s628 + $0x10] sm:$0xff]
    %v632 = vld [vmem:[%s628 + $0x18] sm:$0xff]
    %v633 = vld [vmem:[%s628 + $0x20] sm:$0xff]
    %635 = vset.pattern.permute.xlu0 0
    %636 = vperm.xlu0 %635, %v629
    %v637 = vpop.permute.xlu0 %636
    %640 = vset.pattern.permute.xlu0 0
    %641 = vperm.xlu0 %640, %v630
    %v642 = vpop.permute.xlu0 %641
    %645 = vset.pattern.permute.xlu0 0
    %646 = vperm.xlu0 %645, %v631
    %v647 = vpop.permute.xlu0 %646
    %650 = vset.pattern.permute.xlu0 0
    %651 = vperm.xlu0 %650, %v632
    %v652 = vpop.permute.xlu0 %651
    %655 = vset.pattern.permute.xlu0 0
    %656 = vperm.xlu0 %655, %v633
    %v657 = vpop.permute.xlu0 %656
    %v664 = vunpack.c.l.b16 %v622
    %v665 = vunpack.c.l.b16 %v623
    %v666 = vunpack.c.l.b16 %v624
    %v667 = vunpack.c.l.b16 %v625
    %v668 = vunpack.c.l.b16 %v626
    %v669 = vpack.c.b16 %v665, %v664
    %v670 = vpack.c.b16 %v667, %v666
    %v671 = vpack.c.b16 %v668, %v668
    %v673 = vsel %vm188, %v669, 0
    %v676 = vsel %vm188, %v670, 0
    %v679 = vsel %vm188, %v671, 0
    %v682 = vsel %vm54, %v627, 0
    %684 = vmatprep.subr.bf16.mxu0 0
    %685 = vmatpush1.bf16.msra.mxu0 %v682
    %686 = vmatprep.subr.bf16.mxu0 0
    %687 = vmatpush1.bf16.msra.mxu0 0
    %688 = vmatprep.subr.bf16.mxu0 0
    %689 = vmatpush1.bf16.msra.mxu0 0
    %690 = vmatprep.subr.bf16.mxu0 0
    %691 = vmatpush1.bf16.msra.mxu0 0
    %692 = vmatprep.subr.bf16.mxu0 0
    %693 = vmatpush1.bf16.msra.mxu0 0
    %694 = vmatprep.subr.bf16.mxu0 0
    %695 = vmatpush1.bf16.msra.mxu0 0
    %696 = vmatprep.subr.bf16.mxu0 0
    %697 = vmatpush1.bf16.msra.mxu0 0
    %698 = vmatprep.subr.bf16.mxu0 0
    %699 = vmatpush1.bf16.msra.mxu0 0
    %700 = vmatprep.subr.bf16.mxu0 0
    %701 = vmatpush1.bf16.msra.mxu0 0
    %702 = vmatprep.subr.bf16.mxu0 0
    %703 = vmatpush1.bf16.msra.mxu0 0
    %704 = vmatprep.subr.bf16.mxu0 0
    %705 = vmatpush1.bf16.msra.mxu0 0
    %706 = vmatprep.subr.bf16.mxu0 0
    %707 = vmatpush1.bf16.msra.mxu0 0
    %708 = vmatprep.subr.bf16.mxu0 0
    %709 = vmatpush1.bf16.msra.mxu0 0
    %710 = vmatprep.subr.bf16.mxu0 0
    %711 = vmatpush1.bf16.msra.mxu0 0
    %712 = vmatprep.subr.bf16.mxu0 0
    %713 = vmatpush1.bf16.msra.mxu0 0
    %714 = vmatprep.subr.bf16.mxu0 0
    %715 = vmatpush1.bf16.msra.mxu0 0
    %716 = vmatprep.mubr.bf16.mxu0 0
    %717 = vmatmul.mubr.bf16.gmra.mrb[0].mxu0 %v673
    %v718 = vpop.f32.mrb[0].mxu0
    %v719 = vadd.f32 %v637, %v718
    %v720 = vpop.f32.mrb[0].mxu0
    %v721 = vpop.f32.mrb[0].mxu0
    %v722 = vadd.f32 %v642, %v721
    %v723 = vpop.f32.mrb[0].mxu0
    %724 = vmatprep.mubr.bf16.mxu0 0
    %725 = vmatmul.mubr.bf16.gmra.mrb[0].mxu0 %v676
    %v726 = vpop.f32.mrb[0].mxu0
    %v727 = vadd.f32 %v647, %v726
    %v728 = vpop.f32.mrb[0].mxu0
    %v729 = vpop.f32.mrb[0].mxu0
    %v730 = vadd.f32 %v652, %v729
    %v731 = vpop.f32.mrb[0].mxu0
    %732 = vmatprep.mubr.bf16.mxu0 0
    %733 = vmatmul.mubr.bf16.gmra.mrb[0].mxu0 %v679
    %v734 = vpop.f32.mrb[0].mxu0
    %v735 = vadd.f32 %v657, %v734
    %v736 = vpop.f32.mrb[0].mxu0
    %v737 = vpop.f32.mrb[0].mxu0
    %v738 = vpop.f32.mrb[0].mxu0
    %739 = vdwg.mxu0
    %v740 = vadd.f32 %v383, %v719
    %v741 = vadd.f32 %v384, %v722
    %v742 = vadd.f32 %v385, %v727
    %v743 = vadd.f32 %v386, %v730
    %v744 = vadd.f32 %v387, %v735
    %v745 = vld [vmem:[%s6] sm:$0xf]
    %v746 = vpack.c.bf16 %v741, %v740
    %v747 = vpack.c.bf16 %v743, %v742
    %v748 = vpack.c.bf16 %v744, %v744
    %v750 = vsel %vm47, %v745, 0
    %v753 = vsel %vm54, %v748, 0
    %755 = vmatprep.subr.bf16.mxu0 0
    %756 = vmatpush1.bf16.msra.mxu0 %v746
    %757 = vmatprep.subr.bf16.mxu0 0
    %758 = vmatpush1.bf16.msra.mxu0 %v747
    %759 = vmatprep.subr.bf16.mxu0 0
    %760 = vmatpush1.bf16.msra.mxu0 %v753
    %761 = vmatprep.subr.bf16.mxu0 0
    %762 = vmatpush1.bf16.msra.mxu0 0
    %763 = vmatprep.subr.bf16.mxu0 0
    %764 = vmatpush1.bf16.msra.mxu0 0
    %765 = vmatprep.subr.bf16.mxu0 0
    %766 = vmatpush1.bf16.msra.mxu0 0
    %767 = vmatprep.subr.bf16.mxu0 0
    %768 = vmatpush1.bf16.msra.mxu0 0
    %769 = vmatprep.subr.bf16.mxu0 0
    %770 = vmatpush1.bf16.msra.mxu0 0
    %771 = vmatprep.subr.bf16.mxu0 0
    %772 = vmatpush1.bf16.msra.mxu0 0
    %773 = vmatprep.subr.bf16.mxu0 0
    %774 = vmatpush1.bf16.msra.mxu0 0
    %775 = vmatprep.subr.bf16.mxu0 0
    %776 = vmatpush1.bf16.msra.mxu0 0
    %777 = vmatprep.subr.bf16.mxu0 0
    %778 = vmatpush1.bf16.msra.mxu0 0
    %779 = vmatprep.subr.bf16.mxu0 0
    %780 = vmatpush1.bf16.msra.mxu0 0
    %781 = vmatprep.subr.bf16.mxu0 0
    %782 = vmatpush1.bf16.msra.mxu0 0
    %783 = vmatprep.subr.bf16.mxu0 0
    %784 = vmatpush1.bf16.msra.mxu0 0
    %785 = vmatprep.subr.bf16.mxu0 0
    %786 = vmatpush1.bf16.msra.mxu0 0
    %787 = vmatprep.mubr.bf16.mxu0 0
    %788 = vmatmul.mubr.bf16.gmra.mrb[0].mxu0 %v750
    %v789 = vpop.f32.mrb[0].mxu0
    %v790 = vadd.f32 0.0, %v789
    %v791 = vpop.f32.mrb[0].mxu0
    %v792 = vpop.f32.mrb[0].mxu0
    %v793 = vpop.f32.mrb[0].mxu0
    %794 = vdwg.mxu0
    %795 = vst [vmem:[#allocation2] sm:$0xff] %v790
    // Predicated region
    $region30: #{tpu_custom_call.1} parent=1 // pred_check
      _
    $region31: #{tpu_custom_call.1} parent=1 // pred_check_branch
      %797 = sbr.rel (0) target = $region33
    $region32: #{tpu_custom_call.1} parent=1 // pred_region
      %s799 = ssub.s32 128, 128
      %800 = vsyncadd [#allocation3], %s799
      %s802 = sshll.u32 [#allocation2], 4
      %s803 = int_to_ptr.vmem [resolvable:$true] %s802
      %805 = dma.vmem_to_hbm [thread:$0]  %s803, 128, %s7, [#allocation3]
    $region33: #{tpu_custom_call.1} parent=1 // pred_fallthru
      _
    // Predicated region
    $region34: #{tpu_custom_call.1} parent=1 // pred_check
      _
    $region35: #{tpu_custom_call.1} parent=1 // pred_check_branch
      %807 = sbr.rel (0) target = $region37
    $region36: #{tpu_custom_call.1} parent=1 // pred_region
      %808 = dma.done [#allocation3], 128
    $region37: #{tpu_custom_call.1} parent=1 // pred_fallthru
      _
    %809 = vsyncpa [#allocation3], 1

</llo_original>
